<compile_context>
chip_gen: v5e
topology: v5e:2x2
jax: 0.10.0
libtpu: 0.0.40
codegen_flags: <defaults>
</compile_context>

<pallas_src>
import numpy as np
import jax
import jax.numpy as jnp
from jax.experimental import pallas as pl
from jax.experimental.pallas import tpu as pltpu

# ----------------------------- configuration --------------------------------
B = 2                        # batch size
CFG_SEQ_LEN = 8              # configs.seq_len
PRED_LEN = 4                 # configs.pred_len
S = CFG_SEQ_LEN + PRED_LEN   # hh length inside MASTER (= seq_len + pred_len)
NUM_STAGES = 4
MAX_TIME = 200.0

# Stage thresholds from the PyTorch module.
T0, T1, T2 = 40.0, 60.0, 120.0


# --------------------------------- kernel -----------------------------------
def stage_encoding_kernel(hh_ref, stage_ref):
    """hh_ref: [B, S, 1] (any float dtype) -> stage_ref: [B, S, 4] f32 one-hot."""
    hh = hh_ref[...]                                   # [B, S, 1]
    if hh.dtype != jnp.float32:
        # Cast on the already-loaded vreg (free); keeps compares in f32 on
        # every generation (v5e VPU has no bf16 path).
        hh = hh.astype(jnp.float32)

    one = jnp.float32(1.0)
    zero = jnp.float32(0.0)

    # Exactly the PyTorch module's conditions (NaN -> all-zero row, +inf -> stage 3).
    s0 = jnp.where(hh < T0, one, zero)                                  # hh < 40
    s1 = jnp.where(jnp.logical_and(hh >= T0, hh < T1), one, zero)       # 40 <= hh < 60
    s2 = jnp.where(jnp.logical_and(hh >= T1, hh < T2), one, zero)       # 60 <= hh < 120
    s3 = jnp.where(hh >= T2, one, zero)                                 # hh >= 120

    # Scatter the four per-element flags across the 4 output lanes with a lane
    # iota + selects; the (B, S, 1) operands broadcast along the minor dim, so
    # no in-kernel relayout/transpose is needed.
    b, s, n = stage_ref.shape
    lane = jax.lax.broadcasted_iota(jnp.int32, (b, s, n), 2)            # [B, S, 4]
    out = jnp.where(lane == 0, s0,
          jnp.where(lane == 1, s1,
          jnp.where(lane == 2, s2, s3)))                                # [B, S, 4] f32

    stage_ref[...] = out                                                # single full-slab store


# -------------------------------- wrapper ------------------------------------
@jax.jit
def stage_encoding(hh):
    """hh: [B, S] -> stage: [B, S, 4] f32  (matches StageEncoding.forward)."""
    b, s = hh.shape
    return pl.pallas_call(
        stage_encoding_kernel,
        out_shape=jax.ShapeDtypeStruct((b, s, NUM_STAGES), jnp.float32),
        in_specs=[pl.BlockSpec(memory_space=pltpu.MemorySpace.VMEM)],
        out_specs=pl.BlockSpec(memory_space=pltpu.MemorySpace.VMEM),
    )(hh[:, :, None])
    # ^ trailing-unit reshape on the tiny input only; no dtype cast and no
    #   output transpose in the wrapper — both were folded into the kernel.


# --------------------------- pure-JAX reference ------------------------------
def reference_stage_encoding(hh):
    hh = hh.astype(jnp.float32)
    s0 = (hh < T0).astype(jnp.float32)
    s1 = jnp.logical_and(hh >= T0, hh < T1).astype(jnp.float32)
    s2 = jnp.logical_and(hh >= T1, hh < T2).astype(jnp.float32)
    s3 = (hh >= T2).astype(jnp.float32)
    return jnp.stack([s0, s1, s2, s3], axis=-1)        # [B, S, 4]


# --------------------------------- main ---------------------------------------
if __name__ == "__main__":
    key = jax.random.PRNGKey(0)
    hh = jax.random.uniform(key, (B, S), jnp.float32, 0.0, MAX_TIME)
    # Exercise exact threshold boundaries and special values (same semantics
    # as the PyTorch module, including NaN -> all-zero row, +inf -> stage 3).
    hh = hh.at[0, :4].set(jnp.array([39.5, 40.0, 60.0, 120.0], jnp.float32))
    hh = hh.at[1, 0].set(jnp.inf)
    hh = hh.at[1, 1].set(jnp.nan)

    stage = jax.block_until_ready(stage_encoding(hh))

    ref = reference_stage_encoding(hh)
    np.testing.assert_array_equal(np.asarray(stage), np.asarray(ref))

    # Every non-NaN time step belongs to exactly one stage.
    valid = ~np.isnan(np.asarray(hh))
    np.testing.assert_array_equal(np.asarray(stage).sum(-1)[valid], 1.0)
    # NaN rows are all zeros, matching torch.
    np.testing.assert_array_equal(np.asarray(stage).sum(-1)[~valid], 0.0)

    print("KERNEL_OK")
</pallas_src>

<mosaic_0001>
module attributes {stable_mosaic.version = 11 : i64} {
  func.func @stage_encoding_kernel(%arg0: memref<2x12x1xf32, #tpu.memory_space<vmem>>, %arg1: memref<2x12x4xf32, #tpu.memory_space<vmem>>) attributes {dimension_semantics = [], scalar_prefetch = 0 : i64, scratch_operands = 0 : i64, tpu.core_type = #tpu.core_type<tc>} {
    %c0 = arith.constant 0 : index
    %c0_0 = arith.constant 0 : index
    %c0_1 = arith.constant 0 : index
    %0 = vector.load %arg0[%c0, %c0_0, %c0_1] : memref<2x12x1xf32, #tpu.memory_space<vmem>>, vector<2x12x1xf32>
    %cst = arith.constant 4.000000e+01 : f32
    %1 = vector.broadcast %cst : f32 to vector<2x12x1xf32>
    %2 = arith.cmpf olt, %0, %1 : vector<2x12x1xf32>
    %cst_2 = arith.constant 1.000000e+00 : f32
    %cst_3 = arith.constant 0.000000e+00 : f32
    %3 = vector.broadcast %cst_2 : f32 to vector<2x12x1xf32>
    %4 = vector.broadcast %cst_3 : f32 to vector<2x12x1xf32>
    %5 = arith.select %2, %3, %4 : vector<2x12x1xi1>, vector<2x12x1xf32>
    %cst_4 = arith.constant 4.000000e+01 : f32
    %6 = vector.broadcast %cst_4 : f32 to vector<2x12x1xf32>
    %7 = arith.cmpf oge, %0, %6 : vector<2x12x1xf32>
    %cst_5 = arith.constant 6.000000e+01 : f32
    %8 = vector.broadcast %cst_5 : f32 to vector<2x12x1xf32>
    %9 = arith.cmpf olt, %0, %8 : vector<2x12x1xf32>
    %10 = arith.andi %7, %9 : vector<2x12x1xi1>
    %cst_6 = arith.constant 1.000000e+00 : f32
    %cst_7 = arith.constant 0.000000e+00 : f32
    %11 = vector.broadcast %cst_6 : f32 to vector<2x12x1xf32>
    %12 = vector.broadcast %cst_7 : f32 to vector<2x12x1xf32>
    %13 = arith.select %10, %11, %12 : vector<2x12x1xi1>, vector<2x12x1xf32>
    %cst_8 = arith.constant 6.000000e+01 : f32
    %14 = vector.broadcast %cst_8 : f32 to vector<2x12x1xf32>
    %15 = arith.cmpf oge, %0, %14 : vector<2x12x1xf32>
    %cst_9 = arith.constant 1.200000e+02 : f32
    %16 = vector.broadcast %cst_9 : f32 to vector<2x12x1xf32>
    %17 = arith.cmpf olt, %0, %16 : vector<2x12x1xf32>
    %18 = arith.andi %15, %17 : vector<2x12x1xi1>
    %cst_10 = arith.constant 1.000000e+00 : f32
    %cst_11 = arith.constant 0.000000e+00 : f32
    %19 = vector.broadcast %cst_10 : f32 to vector<2x12x1xf32>
    %20 = vector.broadcast %cst_11 : f32 to vector<2x12x1xf32>
    %21 = arith.select %18, %19, %20 : vector<2x12x1xi1>, vector<2x12x1xf32>
    %cst_12 = arith.constant 1.200000e+02 : f32
    %22 = vector.broadcast %cst_12 : f32 to vector<2x12x1xf32>
    %23 = arith.cmpf oge, %0, %22 : vector<2x12x1xf32>
    %cst_13 = arith.constant 1.000000e+00 : f32
    %cst_14 = arith.constant 0.000000e+00 : f32
    %24 = vector.broadcast %cst_13 : f32 to vector<2x12x1xf32>
    %25 = vector.broadcast %cst_14 : f32 to vector<2x12x1xf32>
    %26 = arith.select %23, %24, %25 : vector<2x12x1xi1>, vector<2x12x1xf32>
    %27 = tpu.iota {dimensions = array<i32: 2>} : vector<2x12x4xi32>
    %c0_i32 = arith.constant 0 : i32
    %28 = vector.broadcast %c0_i32 : i32 to vector<2x12x4xi32>
    %29 = arith.cmpi eq, %27, %28 : vector<2x12x4xi32>
    %c1_i32 = arith.constant 1 : i32
    %30 = vector.broadcast %c1_i32 : i32 to vector<2x12x4xi32>
    %31 = arith.cmpi eq, %27, %30 : vector<2x12x4xi32>
    %c2_i32 = arith.constant 2 : i32
    %32 = vector.broadcast %c2_i32 : i32 to vector<2x12x4xi32>
    %33 = arith.cmpi eq, %27, %32 : vector<2x12x4xi32>
    %34 = vector.shape_cast %21 : vector<2x12x1xf32> to vector<2x12x1xf32>
    %35 = vector.broadcast %34 : vector<2x12x1xf32> to vector<2x12x4xf32>
    %36 = vector.shape_cast %26 : vector<2x12x1xf32> to vector<2x12x1xf32>
    %37 = vector.broadcast %36 : vector<2x12x1xf32> to vector<2x12x4xf32>
    %38 = arith.select %33, %35, %37 : vector<2x12x4xi1>, vector<2x12x4xf32>
    %39 = vector.shape_cast %13 : vector<2x12x1xf32> to vector<2x12x1xf32>
    %40 = vector.broadcast %39 : vector<2x12x1xf32> to vector<2x12x4xf32>
    %41 = arith.select %31, %40, %38 : vector<2x12x4xi1>, vector<2x12x4xf32>
    %42 = vector.shape_cast %5 : vector<2x12x1xf32> to vector<2x12x1xf32>
    %43 = vector.broadcast %42 : vector<2x12x1xf32> to vector<2x12x4xf32>
    %44 = arith.select %29, %43, %41 : vector<2x12x4xi1>, vector<2x12x4xf32>
    %c0_15 = arith.constant 0 : index
    %c0_16 = arith.constant 0 : index
    %c0_17 = arith.constant 0 : index
    %45 = vector.load %arg1[%c0_15, %c0_16, %c0_17] : memref<2x12x4xf32, #tpu.memory_space<vmem>>, vector<2x12x4xf32>
    tpu.vector_store %arg1[%c0_15, %c0_16, %c0_17], %44 {strides = array<i32>} : memref<2x12x4xf32, #tpu.memory_space<vmem>>, vector<2x12x4xf32>,
    return
  }
}

</mosaic_0001>

<llo_original>
// kernel: stage_encoding.1
$region0: #{stage_encoding.1}
  #allocation0 [shape = 'u32[]', space=smem, size = 0x4, offset = 0x4, fixed_abs, tag = 'smem constant byte address 0x4 - core index']
  #allocation1 [shape = 'u32[72,128]{1,0:T(1,128)}', space=vmem, size = 0x9000, scoped, tag = 'internal scratch']
  %s0 = inlined_call_operand.vmem [shape: f32[2,12,1], index: 0, kind: input, shape index: {}]
  %s1 = inlined_call_operand.vmem [shape: f32[2,12,4], index: 1, kind: output, shape index: {}]
  %s2 = sld [smem:[#allocation0]]
  $region14: #{stage_encoding.1} parent=0
    _
  %s4 = ssub.s32 1, %s2
  %s5 = scalar_select 0, %s4, %s2
  // Predicated region
  $region2: #{stage_encoding.1} parent=0 // pred_check
    _
  $region3: #{stage_encoding.1} parent=0 // pred_check_branch
    %7 = sbr.rel (0) target = $region5
  $region4: #{stage_encoding.1} parent=0 // pred_region
    _
  $region5: #{stage_encoding.1} parent=0 // pred_fallthru
    _
  %v8 = vld [vmem:[%s0] sm:$0xff]
  %v9 = vld [vmem:[%s0 + $0x8] sm:$0xf]
  %v10 = vld [vmem:[%s0 + $0x10] sm:$0xff]
  %v11 = vld [vmem:[%s0 + $0x18] sm:$0xf]
  %vm12 = vcmp.lt.f32.partialorder %v8, 40.0
  %vm13 = vcmp.lt.f32.partialorder %v9, 40.0
  %vm14 = vcmp.lt.f32.partialorder %v10, 40.0
  %vm15 = vcmp.lt.f32.partialorder %v11, 40.0
  %v16 = vsel %vm12, 1.0, 0.0
  %v17 = vsel %vm13, 1.0, 0.0
  %v18 = vsel %vm14, 1.0, 0.0
  %v19 = vsel %vm15, 1.0, 0.0
  %vm20 = vcmp.ge.f32.partialorder %v8, 40.0
  %vm21 = vcmp.ge.f32.partialorder %v9, 40.0
  %vm22 = vcmp.ge.f32.partialorder %v10, 40.0
  %vm23 = vcmp.ge.f32.partialorder %v11, 40.0
  %vm24 = vcmp.lt.f32.partialorder %v8, 60.0
  %vm25 = vcmp.lt.f32.partialorder %v9, 60.0
  %vm26 = vcmp.lt.f32.partialorder %v10, 60.0
  %vm27 = vcmp.lt.f32.partialorder %v11, 60.0
  %vm28 = vmand %vm20, %vm24
  %vm29 = vmand %vm21, %vm25
  %vm30 = vmand %vm22, %vm26
  %vm31 = vmand %vm23, %vm27
  %v32 = vsel %vm28, 1.0, 0.0
  %v33 = vsel %vm29, 1.0, 0.0
  %v34 = vsel %vm30, 1.0, 0.0
  %v35 = vsel %vm31, 1.0, 0.0
  %vm36 = vcmp.ge.f32.partialorder %v8, 60.0
  %vm37 = vcmp.ge.f32.partialorder %v9, 60.0
  %vm38 = vcmp.ge.f32.partialorder %v10, 60.0
  %vm39 = vcmp.ge.f32.partialorder %v11, 60.0
  %vm40 = vcmp.lt.f32.partialorder %v8, 120.0
  %vm41 = vcmp.lt.f32.partialorder %v9, 120.0
  %vm42 = vcmp.lt.f32.partialorder %v10, 120.0
  %vm43 = vcmp.lt.f32.partialorder %v11, 120.0
  %vm44 = vmand %vm36, %vm40
  %vm45 = vmand %vm37, %vm41
  %vm46 = vmand %vm38, %vm42
  %vm47 = vmand %vm39, %vm43
  %v48 = vsel %vm44, 1.0, 0.0
  %v49 = vsel %vm45, 1.0, 0.0
  %v50 = vsel %vm46, 1.0, 0.0
  %v51 = vsel %vm47, 1.0, 0.0
  %vm52 = vcmp.ge.f32.partialorder %v8, 120.0
  %vm53 = vcmp.ge.f32.partialorder %v9, 120.0
  %vm54 = vcmp.ge.f32.partialorder %v10, 120.0
  %vm55 = vcmp.ge.f32.partialorder %v11, 120.0
  %v56 = vsel %vm52, 1.0, 0.0
  %v57 = vsel %vm53, 1.0, 0.0
  %v58 = vsel %vm54, 1.0, 0.0
  %v59 = vsel %vm55, 1.0, 0.0
  %v60 = vlaneseq
  %v61 = vand.u32 %v60, 127
  %vm62 = vcmp.eq.s32.totalorder %v61, 0
  %vm63 = vcmp.eq.s32.totalorder %v61, 1
  %vm64 = vcmp.eq.s32.totalorder %v61, 2
  %66 = vset.pattern.permute.xlu0 0
  %67 = vperm.xlu0 %66, %v48
  %v68 = vpop.permute.xlu0 %67
  %71 = vset.pattern.permute.xlu0 0
  %72 = vperm.xlu0 %71, %v49
  %v73 = vpop.permute.xlu0 %72
  %76 = vset.pattern.permute.xlu0 0
  %77 = vperm.xlu0 %76, %v50
  %v78 = vpop.permute.xlu0 %77
  %81 = vset.pattern.permute.xlu0 0
  %82 = vperm.xlu0 %81, %v51
  %v83 = vpop.permute.xlu0 %82
  %86 = vset.pattern.permute.xlu0 0
  %87 = vperm.xlu0 %86, %v56
  %v88 = vpop.permute.xlu0 %87
  %91 = vset.pattern.permute.xlu0 0
  %92 = vperm.xlu0 %91, %v57
  %v93 = vpop.permute.xlu0 %92
  %96 = vset.pattern.permute.xlu0 0
  %97 = vperm.xlu0 %96, %v58
  %v98 = vpop.permute.xlu0 %97
  %101 = vset.pattern.permute.xlu0 0
  %102 = vperm.xlu0 %101, %v59
  %v103 = vpop.permute.xlu0 %102
  %v105 = vsel %vm64, %v68, %v88
  %v106 = vsel %vm64, %v73, %v93
  %v107 = vsel %vm64, %v78, %v98
  %v108 = vsel %vm64, %v83, %v103
  %110 = vset.pattern.permute.xlu0 0
  %111 = vperm.xlu0 %110, %v32
  %v112 = vpop.permute.xlu0 %111
  %115 = vset.pattern.permute.xlu0 0
  %116 = vperm.xlu0 %115, %v33
  %v117 = vpop.permute.xlu0 %116
  %120 = vset.pattern.permute.xlu0 0
  %121 = vperm.xlu0 %120, %v34
  %v122 = vpop.permute.xlu0 %121
  %125 = vset.pattern.permute.xlu0 0
  %126 = vperm.xlu0 %125, %v35
  %v127 = vpop.permute.xlu0 %126
  %v129 = vsel %vm63, %v112, %v105
  %v130 = vsel %vm63, %v117, %v106
  %v131 = vsel %vm63, %v122, %v107
  %v132 = vsel %vm63, %v127, %v108
  %134 = vset.pattern.permute.xlu0 0
  %135 = vperm.xlu0 %134, %v16
  %v136 = vpop.permute.xlu0 %135
  %139 = vset.pattern.permute.xlu0 0
  %140 = vperm.xlu0 %139, %v17
  %v141 = vpop.permute.xlu0 %140
  %144 = vset.pattern.permute.xlu0 0
  %145 = vperm.xlu0 %144, %v18
  %v146 = vpop.permute.xlu0 %145
  %149 = vset.pattern.permute.xlu0 0
  %150 = vperm.xlu0 %149, %v19
  %v151 = vpop.permute.xlu0 %150
  %v153 = vsel %vm62, %v136, %v129
  %v154 = vsel %vm62, %v141, %v130
  %v155 = vsel %vm62, %v146, %v131
  %v156 = vsel %vm62, %v151, %v132
  %vm157 = vcmask 31744
  %158 = vst.msk [vmem:[%s1] sm:$0xff] %vm157, %v153
  %vm159 = vcmask 27648
  %160 = vst.msk [vmem:[%s1 + $0x8] sm:$0xf] %vm159, %v154
  %161 = vst.msk [vmem:[%s1 + $0x10] sm:$0xff] %vm157, %v155
  %162 = vst.msk [vmem:[%s1 + $0x18] sm:$0xf] %vm159, %v156
  // Predicated region
  $region6: #{stage_encoding.1} parent=0 // pred_check
    _
  $region7: #{stage_encoding.1} parent=0 // pred_check_branch
    %164 = sbr.rel (0) target = $region9
  $region8: #{stage_encoding.1} parent=0 // pred_region
    _
  $region9: #{stage_encoding.1} parent=0 // pred_fallthru
    _
  // Predicated region
  $region10: #{stage_encoding.1} parent=0 // pred_check
    _
  $region11: #{stage_encoding.1} parent=0 // pred_check_branch
    %166 = sbr.rel (0) target = $region13
  $region12: #{stage_encoding.1} parent=0 // pred_region
    _
  $region13: #{stage_encoding.1} parent=0 // pred_fallthru
    _

</llo_original>
